<compile_context>
chip_gen: v6e
topology: v6e:2x2x1
jax: 0.10.0
libtpu: 0.0.40
codegen_flags: <defaults>
</compile_context>

<pallas_src>
import jax
import jax.numpy as jnp
from jax.experimental import pallas as pl
from jax.experimental.pallas import tpu as pltpu


# ---------------------------------------------------------------------------
# Primary path: zero-copy identity via input/output buffer aliasing.
# ---------------------------------------------------------------------------
def _alias_identity_kernel(x_ref, o_ref):
    # x_ref and o_ref name the SAME HBM buffer (input_output_aliases={0: 0}),
    # so the output already holds the input data: no DMA, no compute.
    # `touch` pins a fake read+write dependency on the aliased output so the
    # otherwise-empty kernel is not elided.
    del x_ref
    pltpu.touch(o_ref)


def _identity_alias(x):
    return pl.pallas_call(
        _alias_identity_kernel,
        out_shape=jax.ShapeDtypeStruct(x.shape, x.dtype),
        in_specs=[pl.BlockSpec(memory_space=pl.ANY)],
        out_specs=pl.BlockSpec(memory_space=pl.ANY),
        input_output_aliases={0: 0},
        compiler_params=pltpu.CompilerParams(has_side_effects=True),
    )(x)


# ---------------------------------------------------------------------------
# Fallback path: real tiled VMEM copy (used when donation is not allowed).
# ---------------------------------------------------------------------------
_COPY_BLOCK_BYTES = 8 * 1024 * 1024    # per-block cap; 4 double-buffered blocks
_VMEM_LIMIT_BYTES = 48 * 1024 * 1024   # < v7x 64 MiB physical; fine on v5e/v6e
_SUBLANE_MULTIPLE = {1: 32, 2: 16, 4: 8, 8: 8}   # packed-tile rows per itemsize


def _copy_kernel(x_ref, o_ref):
    o_ref[...] = x_ref[...]


def _whole_block_copy(arr):
    # Single-block copy (block == full array dims is always layout-legal).
    # Only used for tiny tails (< 128 elements) or tiny whole arrays.
    return pl.pallas_call(
        _copy_kernel,
        out_shape=jax.ShapeDtypeStruct(arr.shape, arr.dtype),
        compiler_params=pltpu.CompilerParams(
            vmem_limit_bytes=_VMEM_LIMIT_BYTES),
    )(arr)


def _tiled_copy_2d(x2d):
    rows, lane = x2d.shape
    itemsize = jnp.dtype(x2d.dtype).itemsize
    sub = _SUBLANE_MULTIPLE.get(itemsize, 8)

    # Largest row block under the byte cap, rounded down to the packed-tile
    # sublane multiple for this dtype.
    max_block_rows = max(sub, _COPY_BLOCK_BYTES // (lane * itemsize))
    max_block_rows = max(sub, (max_block_rows // sub) * sub)
    if rows <= max_block_rows:
        block_rows = rows            # block == full extent -> always legal
    else:
        block_rows = max_block_rows  # multiple of (8,128); tail block is masked

    return pl.pallas_call(
        _copy_kernel,
        out_shape=jax.ShapeDtypeStruct((rows, lane), x2d.dtype),
        grid=(pl.cdiv(rows, block_rows),),
        in_specs=[pl.BlockSpec((block_rows, lane), lambda i: (i, 0))],
        out_specs=pl.BlockSpec((block_rows, lane), lambda i: (i, 0)),
        compiler_params=pltpu.CompilerParams(
            dimension_semantics=("parallel",),
            vmem_limit_bytes=_VMEM_LIMIT_BYTES,
        ),
    )(x2d)


def _identity_copy(x):
    orig_shape = x.shape
    n = x.size
    if n == 0:
        return x

    # Lane-dense factorization: last dim a multiple of 128 (unmasked vst).
    lane = next((c for c in (2048, 1024, 512, 256, 128) if n % c == 0), None)
    if lane is not None:
        return _tiled_copy_2d(x.reshape(n // lane, lane)).reshape(orig_shape)

    # Element count not a multiple of 128: tile the 128-aligned head, copy the
    # (< 128-element) tail as a tiny single block, then stitch back together.
    flat = x.reshape(-1)
    head = (n // 128) * 128
    if head == 0:
        return _whole_block_copy(flat).reshape(orig_shape)
    out_head = _tiled_copy_2d(flat[:head].reshape(head // 128, 128)).reshape(-1)
    out_tail = _whole_block_copy(flat[head:])
    return jnp.concatenate([out_head, out_tail]).reshape(orig_shape)


# ---------------------------------------------------------------------------
# Public wrapper (mirrors Dummy_MLPLayer.forward).
# ---------------------------------------------------------------------------
def dummy_mlp_layer_forward(x, params=None, *, donate=True):
    """Pallas equivalent of Dummy_MLPLayer.forward(x) -> x.

    `params` mirrors the module's (unused) DummyLayer weights; they do not
    participate in the forward pass, exactly like the PyTorch reference.

    donate=True (default): the input buffer is aliased to the output with a
    no-op kernel body -> zero HBM traffic; the caller must treat `x` as
    consumed (donated).
    donate=False: emits a tiled VMEM identity copy instead (x stays valid).
    """
    del params  # weights exist on the module but are never used in forward
    if donate:
        try:
            return _identity_alias(x)
        except Exception:  # lowering fallback: keep running via the copy path
            pass
    return _identity_copy(x)


def init_dummy_mlp_layer_params(key):
    """Deterministic init matching Dummy_MLPLayer.__init__ parameter shapes.

    Each DummyLayer owns a torch.randn(1) weight; none are used in forward.
    """
    k1, k2, k3 = jax.random.split(key, 3)
    return {
        "up_proj.weight": jax.random.normal(k1, (1,), jnp.float32),
        "down_proj.weight": jax.random.normal(k2, (1,), jnp.float32),
        "shared_expert.up_proj.weight": jax.random.normal(k3, (1,), jnp.float32),
    }


if __name__ == "__main__":
    key = jax.random.PRNGKey(0)
    k_params, k_x = jax.random.split(key)

    params = init_dummy_mlp_layer_params(k_params)

    # Small hidden-states input: [batch=2, seq=8, hidden=32]
    x = jax.random.normal(k_x, (2, 8, 32), jnp.float32)

    # The zero-copy path donates x's buffer; keep an independent copy for the
    # correctness check (and to exercise the non-donating copy path).
    x_expected = jnp.copy(x)
    jax.block_until_ready(x_expected)

    out = dummy_mlp_layer_forward(x, params)            # aliased zero-copy path
    out = jax.block_until_ready(out)
    assert out.shape == x_expected.shape and out.dtype == x_expected.dtype
    assert bool(jnp.array_equal(out, x_expected))

    out_copy = dummy_mlp_layer_forward(x_expected, params, donate=False)
    out_copy = jax.block_until_ready(out_copy)           # tiled-copy path
    assert bool(jnp.array_equal(out_copy, x_expected))

    print("KERNEL_OK")
</pallas_src>

<mosaic_0001>
module attributes {stable_mosaic.version = 11 : i64} {
  func.func @_alias_identity_kernel(%arg0: memref<2x8x32xf32, #tpu.memory_space<any>>, %arg1: memref<2x8x32xf32, #tpu.memory_space<any>>) attributes {dimension_semantics = [], scalar_prefetch = 0 : i64, scratch_operands = 0 : i64, tpu.core_type = #tpu.core_type<tc>} {
    return
  }
}

module attributes {stable_mosaic.version = 11 : i64} {
  func.func @_copy_kernel(%arg0: i32, %arg1: memref<1x512xf32, #tpu.memory_space<vmem>>, %arg2: memref<1x512xf32, #tpu.memory_space<vmem>>) attributes {dimension_semantics = [#tpu.dimension_semantics<parallel>], iteration_bounds = array<i64: 1>, scalar_prefetch = 0 : i64, scratch_operands = 0 : i64, tpu.core_type = #tpu.core_type<tc>, window_params = [{transform_indices = @transform_0, window_bounds = array<i64: 1, 512>}, {transform_indices = @transform_1, window_bounds = array<i64: 1, 512>}]} {
    %c0 = arith.constant 0 : index
    %c0_0 = arith.constant 0 : index
    %0 = vector.load %arg1[%c0, %c0_0] : memref<1x512xf32, #tpu.memory_space<vmem>>, vector<1x512xf32>
    %c0_1 = arith.constant 0 : index
    %c0_2 = arith.constant 0 : index
    %1 = vector.load %arg2[%c0_1, %c0_2] : memref<1x512xf32, #tpu.memory_space<vmem>>, vector<1x512xf32>
    tpu.vector_store %arg2[%c0_1, %c0_2], %0 {strides = array<i32>} : memref<1x512xf32, #tpu.memory_space<vmem>>, vector<1x512xf32>,
    return
  }
  func.func @transform_0(%arg0: i32) -> (i32, i32) {
    %c0_i32 = arith.constant 0 : i32
    %c0_i32_0 = arith.constant 0 : i32
    return %arg0, %c0_i32 : i32, i32
  }
  func.func @transform_1(%arg0: i32) -> (i32, i32) {
    %c0_i32 = arith.constant 0 : i32
    %c0_i32_0 = arith.constant 0 : i32
    return %arg0, %c0_i32 : i32, i32
  }
}

</mosaic_0001>

<llo_original>
// kernel: tpu_custom_call.1
$region0: #{tpu_custom_call.1}
  #allocation0 [shape = 'u32[]', space=smem, size = 0x4, offset = 0x4, fixed_abs, tag = 'smem constant byte address 0x4 - core index']
  #allocation1 [shape = 'u32[144,128]{1,0:T(1,128)}', space=vmem, size = 0x12000, scoped, tag = 'internal scratch']
  %s0 = inlined_call_operand.hbm [shape: f32[2,8,32], index: 0, kind: input, shape index: {}, may-alias: {0,1}]
  %s1 = inlined_call_operand.hbm [shape: f32[2,8,32], index: 1, kind: output, shape index: {}, may-alias: {0,1}]
  %s2 = sld [smem:[#allocation0]]
  $region2: #{tpu_custom_call.1} parent=0
    _
  %s4 = ssub.s32 1, %s2
  %s5 = scalar_select 0, %s4, %s2

// kernel: tpu_custom_call.1
$region0: #{tpu_custom_call.1}
  #allocation0 [shape = 'u32[]', space=smem, size = 0x4, offset = 0x4, fixed_abs, tag = 'smem constant byte address 0x4 - core index']
  #allocation1 [shape = 'u32[144,128]{1,0:T(1,128)}', space=vmem, size = 0x12000, scoped, tag = 'internal scratch']
  %s0 = inlined_call_operand.hbm [shape: f32[1,512], index: 0, kind: input, shape index: {}]
  %s1 = inlined_call_operand.hbm [shape: f32[1,512], index: 1, kind: output, shape index: {}]
  %s2 = sld [smem:[#allocation0]]
  $region18: #{tpu_custom_call.1} parent=0
    _
  %s4 = ssub.s32 1, %s2
  %s5 = scalar_select 0, %s4, %s2
  $region1: #{tpu_custom_call.1} parent=0
    #allocation2 [shape = 'u8[2048]{0}', space=vmem, size = 0x800, scoped, tag = 'input window, operand 0, single buffered']
    #allocation3 [shape = 's32[1]{0}', space=sflag, size = 0x4, scoped, tag = 'scoped memory for tpu_custom_call.1']
    #allocation4 [shape = 's32[1]{0}', space=sflag, size = 0x4, scoped, tag = 'scoped memory for tpu_custom_call.1']
    #allocation5 [shape = 'u8[2048]{0}', space=vmem, size = 0x800, scoped, tag = 'output window, operand 0, single buffered']
    %6 = vsyncpa [#allocation3], 0
    %7 = vsyncpa [#allocation4], 0
    // Predicated region
    $region2: #{tpu_custom_call.1} parent=1 // pred_check
      _
    $region3: #{tpu_custom_call.1} parent=1 // pred_check_branch
      %9 = sbr.rel (0) target = $region5
    $region4: #{tpu_custom_call.1} parent=1 // pred_region
      %s11 = ssub.s32 64, 64
      %12 = vsyncadd [#allocation3], %s11
      %s14 = sshll.u32 [#allocation2], 4
      %s15 = int_to_ptr.vmem [resolvable:$true] %s14
      %17 = dma.hbm_to_vmem [thread:$0]  %s0, 64, %s15, [#allocation3]
    $region5: #{tpu_custom_call.1} parent=1 // pred_fallthru
      _
    // Predicated region
    $region6: #{tpu_custom_call.1} parent=1 // pred_check
      _
    $region7: #{tpu_custom_call.1} parent=1 // pred_check_branch
      %19 = sbr.rel (0) target = $region9
    $region8: #{tpu_custom_call.1} parent=1 // pred_region
      %20 = dma.done [#allocation3], 64
    $region9: #{tpu_custom_call.1} parent=1 // pred_fallthru
      _
    %v21 = vld [vmem:[#allocation2] sm:$0xf]
    %v22 = vlaneseq
    %vm23 = vcmp.ge.s32.totalorder %v22, 0
    %vm24 = vcmp.lt.s32.totalorder %v22, 512
    %vm25 = vmand %vm23, %vm24
    %26 = vst.msk [vmem:[#allocation5] sm:$0xf] %vm25, %v21
    // Predicated region
    $region10: #{tpu_custom_call.1} parent=1 // pred_check
      _
    $region11: #{tpu_custom_call.1} parent=1 // pred_check_branch
      %28 = sbr.rel (0) target = $region13
    $region12: #{tpu_custom_call.1} parent=1 // pred_region
      %s30 = ssub.s32 64, 64
      %31 = vsyncadd [#allocation4], %s30
      %s33 = sshll.u32 [#allocation5], 4
      %s34 = int_to_ptr.vmem [resolvable:$true] %s33
      %36 = dma.vmem_to_hbm [thread:$0]  %s34, 64, %s1, [#allocation4]
    $region13: #{tpu_custom_call.1} parent=1 // pred_fallthru
      _
    // Predicated region
    $region14: #{tpu_custom_call.1} parent=1 // pred_check
      _
    $region15: #{tpu_custom_call.1} parent=1 // pred_check_branch
      %38 = sbr.rel (0) target = $region17
    $region16: #{tpu_custom_call.1} parent=1 // pred_region
      %39 = dma.done [#allocation4], 64
    $region17: #{tpu_custom_call.1} parent=1 // pred_fallthru
      _
    %40 = vsyncpa [#allocation3], 1
    %41 = vsyncpa [#allocation4], 1

</llo_original>
